<compile_context>
chip_gen: v5e
topology: v5e:2x2
jax: 0.10.0
libtpu: 0.0.40
codegen_flags: <defaults>
</compile_context>

<pallas_src>
import functools
import math

import jax
import jax.numpy as jnp
from jax.experimental import pallas as pl
from jax.experimental.pallas import tpu as pltpu


def transformer_block_kernel(x_ref, w_ref, b_ref, o_ref, *, n_heads, d_model):
    """One batch element per grid step.

    x_ref : (L, P)     f32   activations, zero-padded D -> P lanes
    w_ref : (4, P, P)  bf16  [Wqkv (Q pre-scaled) | Wo | W1 | W2], zero-padded
    b_ref : (8, P)     f32   rows 0..3 = [bqkv (bq pre-scaled), bo, b1, b2]
    o_ref : (L, P)     f32   x + attn + mlp ; padded lanes stay exactly zero
    """
    f32, bf16 = jnp.float32, jnp.bfloat16
    L, P = x_ref.shape
    D = d_model
    hd = D // n_heads
    neg_big = f32(-1e30)                 # large finite negative: NaN-safe causal mask

    x = x_ref[...]                       # (L, P) f32 -- residual path stays f32
    b = b_ref[...]                       # (8, P) f32

    # ---- fused QKV projection: one lane-dense (L,P)@(P,P) MXU pass ----
    # Columns of w_ref[0]: [Q heads | K heads | V heads | zero pad]; Q columns and
    # b[0] Q entries were pre-scaled by 1/sqrt(hd) in the wrapper.
    qkv = jnp.dot(x.astype(bf16), w_ref[0], preferred_element_type=f32) + b[0:1, :]

    # Causal mask, shared across heads.
    row = jax.lax.broadcasted_iota(jnp.int32, (L, L), 0)
    col = jax.lax.broadcasted_iota(jnp.int32, (L, L), 1)
    causal = col <= row

    # Contract the shared minor dim: q @ k^T without materializing a transpose of K.
    dn_nt = (((1,), (1,)), ((), ()))

    # ---- per-head attention (static unroll, n_heads is small) ----
    ys = []
    for h in range(n_heads):
        qh = qkv[:, h * hd:(h + 1) * hd].astype(bf16)                  # (L, hd)
        kh = qkv[:, D + h * hd:D + (h + 1) * hd].astype(bf16)          # (L, hd)
        vh = qkv[:, 2 * D + h * hd:2 * D + (h + 1) * hd].astype(bf16)  # (L, hd)

        s = jax.lax.dot_general(qh, kh, dn_nt, preferred_element_type=f32)  # (L, L)
        s = jnp.where(causal, s, neg_big)
        m = jnp.max(s, axis=-1, keepdims=True)
        e = jnp.exp(s - m)
        inv = pl.reciprocal(jnp.sum(e, axis=-1, keepdims=True), approx=True)  # EUP
        p = (e * inv).astype(bf16)
        ys.append(jnp.dot(p, vh, preferred_element_type=f32))               # (L, hd) f32

    # Concatenate heads (tiny lane concat) and run ONE output projection matmul.
    # Only rows 0:D of the padded Wo are real (sublane-tile aligned static ref slice).
    y = jnp.concatenate(ys, axis=-1).astype(bf16)                            # (L, D)
    attn = jnp.dot(y, w_ref[1, 0:D, :], preferred_element_type=f32) + b[1:2, :]  # (L, P)

    # ---- residual 1 (f32) ----
    x1 = x + attn

    # ---- MLP: Linear -> SiLU -> Linear, all lane-dense (P x P) ----
    h1 = jnp.dot(x1.astype(bf16), w_ref[2], preferred_element_type=f32) + b[2:3, :]
    h1 = h1 * jax.nn.sigmoid(h1)                                             # SiLU in f32 (EUP)
    mlp = jnp.dot(h1.astype(bf16), w_ref[3], preferred_element_type=f32) + b[3:4, :]

    # ---- residual 2: full-128-lane unmasked store ----
    o_ref[...] = (x1 + mlp).astype(o_ref.dtype)


def _pad_to(a, shape):
    return jnp.pad(a, [(0, t - s) for s, t in zip(a.shape, shape)])


def transformer_block(x, params, *, n_heads):
    """x: (B, L, D) float32. params: (in_features, out_features) weights, (1, out) biases."""
    B, L, D = x.shape
    hd = D // n_heads
    H = 4 * D
    # Single lane-dense pad target so all four weight slabs stack into one operand.
    # (For non-toy D the packs would be split / tiled instead.)
    P = 128 * ((max(D, 3 * D, H) + 127) // 128)
    bf16, f32 = jnp.bfloat16, jnp.float32
    scale = 1.0 / math.sqrt(hd)

    # ---- wrapper-side layout plumbing (plain XLA) ----
    # Fused QKV weight; PyTorch's .view() head split means columns h*hd:(h+1)*hd of each
    # projection already belong to head h, so no reordering is needed. The 1/sqrt(hd)
    # score scale is folded into the Q columns/bias (O(D^2) once, not O(L^2) per call).
    wqkv = jnp.concatenate([params["wq"] * scale, params["wk"], params["wv"]], axis=1)
    bqkv = jnp.concatenate([params["bq"] * scale, params["bk"], params["bv"]], axis=1)

    w_all = jnp.stack([
        _pad_to(wqkv, (P, P)),
        _pad_to(params["wo"], (P, P)),
        _pad_to(params["w1"], (P, P)),
        _pad_to(params["w2"], (P, P)),
    ]).astype(bf16)                                            # (4, P, P) bf16

    b_rows = jnp.stack([
        _pad_to(bqkv[0], (P,)),
        _pad_to(params["bo"][0], (P,)),
        _pad_to(params["b1"][0], (P,)),
        _pad_to(params["b2"][0], (P,)),
    ])
    b_all = _pad_to(b_rows, (8, P)).astype(f32)                # (8, P): full sublane tile

    x_pad = _pad_to(x, (B, L, P)).astype(f32)                  # lane-dense activations

    kernel = functools.partial(transformer_block_kernel, n_heads=n_heads, d_model=D)

    out_pad = pl.pallas_call(
        kernel,
        out_shape=jax.ShapeDtypeStruct((B, L, P), x.dtype),
        grid=(B,),  # one batch element per step; "parallel" lets v7x use both TensorCores
        in_specs=[
            pl.BlockSpec((None, L, P), lambda bi: (bi, 0, 0)),
            pl.BlockSpec((4, P, P), lambda bi: (0, 0, 0)),  # same block every step -> no re-DMA
            pl.BlockSpec((8, P), lambda bi: (0, 0)),
        ],
        out_specs=pl.BlockSpec((None, L, P), lambda bi: (bi, 0, 0)),
        compiler_params=pltpu.CompilerParams(dimension_semantics=("parallel",)),
    )(x_pad, w_all, b_all)

    return out_pad[:, :, :D]   # drop the lane padding outside the kernel


def transformer_block_ref(x, params, *, n_heads):
    """Pure-JAX f32 reference matching the PyTorch forward (eval mode)."""
    B, L, D = x.shape
    hd = D // n_heads
    q = x @ params["wq"] + params["bq"]
    k = x @ params["wk"] + params["bk"]
    v = x @ params["wv"] + params["bv"]
    q = q.reshape(B, L, n_heads, hd).transpose(0, 2, 1, 3)
    k = k.reshape(B, L, n_heads, hd).transpose(0, 2, 1, 3)
    v = v.reshape(B, L, n_heads, hd).transpose(0, 2, 1, 3)
    s = jnp.einsum("bhld,bhmd->bhlm", q, k) / math.sqrt(hd)
    mask = jnp.tril(jnp.ones((L, L), dtype=bool))
    s = jnp.where(mask[None, None], s, -jnp.inf)
    p = jax.nn.softmax(s, axis=-1)
    y = jnp.einsum("bhlm,bhmd->bhld", p, v)
    y = y.transpose(0, 2, 1, 3).reshape(B, L, D)
    attn = y @ params["wo"] + params["bo"]
    x1 = x + attn
    h1 = x1 @ params["w1"] + params["b1"]
    h1 = h1 * jax.nn.sigmoid(h1)
    m = h1 @ params["w2"] + params["b2"]
    return x1 + m


def init_params(key, embed_dim):
    D, H = embed_dim, 4 * embed_dim
    keys = jax.random.split(key, 12)
    s = 0.02
    return {
        "wq": s * jax.random.normal(keys[0], (D, D), jnp.float32),
        "bq": s * jax.random.normal(keys[1], (1, D), jnp.float32),
        "wk": s * jax.random.normal(keys[2], (D, D), jnp.float32),
        "bk": s * jax.random.normal(keys[3], (1, D), jnp.float32),
        "wv": s * jax.random.normal(keys[4], (D, D), jnp.float32),
        "bv": s * jax.random.normal(keys[5], (1, D), jnp.float32),
        "wo": s * jax.random.normal(keys[6], (D, D), jnp.float32),
        "bo": s * jax.random.normal(keys[7], (1, D), jnp.float32),
        "w1": s * jax.random.normal(keys[8], (D, H), jnp.float32),
        "b1": s * jax.random.normal(keys[9], (1, H), jnp.float32),
        "w2": s * jax.random.normal(keys[10], (H, D), jnp.float32),
        "b2": s * jax.random.normal(keys[11], (1, D), jnp.float32),
    }


if __name__ == "__main__":
    # conf equivalent: embed_dim=32, n_heads=4, seq_len=8, dropout_rate=0.0
    B, L, D, n_heads = 2, 8, 32, 4

    key = jax.random.PRNGKey(0)
    k_x, k_p = jax.random.split(key)
    x = jax.random.normal(k_x, (B, L, D), jnp.float32)
    params = init_params(k_p, D)

    out = jax.block_until_ready(transformer_block(x, params, n_heads=n_heads))

    ref = transformer_block_ref(x, params, n_heads=n_heads)
    assert out.shape == (B, L, D)
    max_err = float(jnp.max(jnp.abs(out.astype(jnp.float32) - ref)))
    # bf16 matmul operands + approx reciprocal => compare at a matching tolerance.
    assert jnp.allclose(out.astype(jnp.float32), ref, atol=5e-3, rtol=5e-3), (
        f"mismatch vs JAX reference, max abs err = {max_err}")

    print("KERNEL_OK")
</pallas_src>

<mosaic_0001>
module attributes {stable_mosaic.version = 11 : i64} {
  func.func @transformer_block_kernel(%arg0: i32, %arg1: memref<1x8x128xf32, #tpu.memory_space<vmem>>, %arg2: memref<4x128x128xbf16, #tpu.memory_space<vmem>>, %arg3: memref<8x128xf32, #tpu.memory_space<vmem>>, %arg4: memref<1x8x128xf32, #tpu.memory_space<vmem>>) attributes {dimension_semantics = [#tpu.dimension_semantics<parallel>], iteration_bounds = array<i64: 2>, scalar_prefetch = 0 : i64, scratch_operands = 0 : i64, tpu.core_type = #tpu.core_type<tc>, window_params = [{transform_indices = @transform_0, window_bounds = array<i64: 1, 8, 128>}, {pipeline_mode = #tpu.pipeline_mode<synchronous>, transform_indices = @transform_1, window_bounds = array<i64: 4, 128, 128>}, {pipeline_mode = #tpu.pipeline_mode<synchronous>, transform_indices = @transform_2, window_bounds = array<i64: 8, 128>}, {transform_indices = @transform_3, window_bounds = array<i64: 1, 8, 128>}]} {
    %c0 = arith.constant 0 : index
    %c0_0 = arith.constant 0 : index
    %c0_1 = arith.constant 0 : index
    %0 = vector.load %arg1[%c0, %c0_0, %c0_1] : memref<1x8x128xf32, #tpu.memory_space<vmem>>, vector<1x8x128xf32>
    %1 = vector.shape_cast %0 : vector<1x8x128xf32> to vector<8x128xf32>
    %c0_2 = arith.constant 0 : index
    %c0_3 = arith.constant 0 : index
    %2 = vector.load %arg3[%c0_2, %c0_3] : memref<8x128xf32, #tpu.memory_space<vmem>>, vector<8x128xf32>
    %3 = arith.truncf %1 : vector<8x128xf32> to vector<8x128xbf16>
    %c0_4 = arith.constant 0 : index
    %c0_5 = arith.constant 0 : index
    %c0_6 = arith.constant 0 : index
    %4 = vector.load %arg2[%c0_4, %c0_5, %c0_6] : memref<4x128x128xbf16, #tpu.memory_space<vmem>>, vector<1x128x128xbf16>
    %5 = vector.shape_cast %4 : vector<1x128x128xbf16> to vector<128x128xbf16>
    %cst = arith.constant dense<0.000000e+00> : vector<8x128xf32>
    %6 = tpu.matmul %3, %5, %cst {dimension_numbers = #tpu.dot_dimension_numbers<[1], [0], [0], [1], [0, 0, 1, 1], [], []>} : vector<8x128xbf16>, vector<128x128xbf16>, vector<8x128xf32> -> vector<8x128xf32>
    %7 = vector.extract_strided_slice %2 {offsets = [0, 0], sizes = [1, 128], strides = [1, 1]} : vector<8x128xf32> to vector<1x128xf32>
    %8 = vector.broadcast %7 : vector<1x128xf32> to vector<8x128xf32>
    %9 = arith.addf %6, %8 : vector<8x128xf32>
    %10 = tpu.iota {dimensions = array<i32: 0>} : vector<8x8xi32>
    %11 = tpu.iota {dimensions = array<i32: 1>} : vector<8x8xi32>
    %12 = arith.cmpi sle, %11, %10 : vector<8x8xi32>
    %13 = vector.extract_strided_slice %9 {offsets = [0, 0], sizes = [8, 8], strides = [1, 1]} : vector<8x128xf32> to vector<8x8xf32>
    %14 = arith.truncf %13 : vector<8x8xf32> to vector<8x8xbf16>
    %15 = vector.extract_strided_slice %9 {offsets = [0, 32], sizes = [8, 8], strides = [1, 1]} : vector<8x128xf32> to vector<8x8xf32>
    %16 = arith.truncf %15 : vector<8x8xf32> to vector<8x8xbf16>
    %17 = vector.extract_strided_slice %9 {offsets = [0, 64], sizes = [8, 8], strides = [1, 1]} : vector<8x128xf32> to vector<8x8xf32>
    %18 = arith.truncf %17 : vector<8x8xf32> to vector<8x8xbf16>
    %cst_7 = arith.constant dense<0.000000e+00> : vector<8x8xf32>
    %19 = tpu.matmul %14, %16, %cst_7 {dimension_numbers = #tpu.dot_dimension_numbers<[1], [1], [0], [0], [0, 0, 1, 0], [], []>} : vector<8x8xbf16>, vector<8x8xbf16>, vector<8x8xf32> -> vector<8x8xf32>
    %cst_8 = arith.constant -1.000000e+30 : f32
    %20 = vector.broadcast %cst_8 : f32 to vector<8x8xf32>
    %21 = arith.select %12, %19, %20 : vector<8x8xi1>, vector<8x8xf32>
    %cst_9 = arith.constant dense<0xFF800000> : vector<8xf32>
    %22 = vector.multi_reduction <maximumf>, %21, %cst_9 [1] : vector<8x8xf32> to vector<8xf32>
    %23 = vector.shape_cast %22 : vector<8xf32> to vector<8x1xf32>
    %24 = vector.broadcast %23 : vector<8x1xf32> to vector<8x8xf32>
    %25 = arith.subf %21, %24 : vector<8x8xf32>
    %26 = math.exp %25 : vector<8x8xf32>
    %cst_10 = arith.constant dense<0.000000e+00> : vector<8xf32>
    %27 = vector.multi_reduction <add>, %26, %cst_10 [1] : vector<8x8xf32> to vector<8xf32>
    %28 = vector.shape_cast %27 : vector<8xf32> to vector<8x1xf32>
    %29 = tpu.reciprocal %28 {approx = true} : vector<8x1xf32> -> vector<8x1xf32>
    %30 = vector.broadcast %29 : vector<8x1xf32> to vector<8x8xf32>
    %31 = arith.mulf %26, %30 : vector<8x8xf32>
    %32 = arith.truncf %31 : vector<8x8xf32> to vector<8x8xbf16>
    %cst_11 = arith.constant dense<0.000000e+00> : vector<8x8xf32>
    %33 = tpu.matmul %32, %18, %cst_11 {dimension_numbers = #tpu.dot_dimension_numbers<[1], [0], [0], [1], [0, 0, 1, 1], [], []>} : vector<8x8xbf16>, vector<8x8xbf16>, vector<8x8xf32> -> vector<8x8xf32>
    %34 = vector.extract_strided_slice %9 {offsets = [0, 8], sizes = [8, 8], strides = [1, 1]} : vector<8x128xf32> to vector<8x8xf32>
    %35 = arith.truncf %34 : vector<8x8xf32> to vector<8x8xbf16>
    %36 = vector.extract_strided_slice %9 {offsets = [0, 40], sizes = [8, 8], strides = [1, 1]} : vector<8x128xf32> to vector<8x8xf32>
    %37 = arith.truncf %36 : vector<8x8xf32> to vector<8x8xbf16>
    %38 = vector.extract_strided_slice %9 {offsets = [0, 72], sizes = [8, 8], strides = [1, 1]} : vector<8x128xf32> to vector<8x8xf32>
    %39 = arith.truncf %38 : vector<8x8xf32> to vector<8x8xbf16>
    %cst_12 = arith.constant dense<0.000000e+00> : vector<8x8xf32>
    %40 = tpu.matmul %35, %37, %cst_12 {dimension_numbers = #tpu.dot_dimension_numbers<[1], [1], [0], [0], [0, 0, 1, 0], [], []>} : vector<8x8xbf16>, vector<8x8xbf16>, vector<8x8xf32> -> vector<8x8xf32>
    %cst_13 = arith.constant -1.000000e+30 : f32
    %41 = vector.broadcast %cst_13 : f32 to vector<8x8xf32>
    %42 = arith.select %12, %40, %41 : vector<8x8xi1>, vector<8x8xf32>
    %cst_14 = arith.constant dense<0xFF800000> : vector<8xf32>
    %43 = vector.multi_reduction <maximumf>, %42, %cst_14 [1] : vector<8x8xf32> to vector<8xf32>
    %44 = vector.shape_cast %43 : vector<8xf32> to vector<8x1xf32>
    %45 = vector.broadcast %44 : vector<8x1xf32> to vector<8x8xf32>
    %46 = arith.subf %42, %45 : vector<8x8xf32>
    %47 = math.exp %46 : vector<8x8xf32>
    %cst_15 = arith.constant dense<0.000000e+00> : vector<8xf32>
    %48 = vector.multi_reduction <add>, %47, %cst_15 [1] : vector<8x8xf32> to vector<8xf32>
    %49 = vector.shape_cast %48 : vector<8xf32> to vector<8x1xf32>
    %50 = tpu.reciprocal %49 {approx = true} : vector<8x1xf32> -> vector<8x1xf32>
    %51 = vector.broadcast %50 : vector<8x1xf32> to vector<8x8xf32>
    %52 = arith.mulf %47, %51 : vector<8x8xf32>
    %53 = arith.truncf %52 : vector<8x8xf32> to vector<8x8xbf16>
    %cst_16 = arith.constant dense<0.000000e+00> : vector<8x8xf32>
    %54 = tpu.matmul %53, %39, %cst_16 {dimension_numbers = #tpu.dot_dimension_numbers<[1], [0], [0], [1], [0, 0, 1, 1], [], []>} : vector<8x8xbf16>, vector<8x8xbf16>, vector<8x8xf32> -> vector<8x8xf32>
    %55 = vector.extract_strided_slice %9 {offsets = [0, 16], sizes = [8, 8], strides = [1, 1]} : vector<8x128xf32> to vector<8x8xf32>
    %56 = arith.truncf %55 : vector<8x8xf32> to vector<8x8xbf16>
    %57 = vector.extract_strided_slice %9 {offsets = [0, 48], sizes = [8, 8], strides = [1, 1]} : vector<8x128xf32> to vector<8x8xf32>
    %58 = arith.truncf %57 : vector<8x8xf32> to vector<8x8xbf16>
    %59 = vector.extract_strided_slice %9 {offsets = [0, 80], sizes = [8, 8], strides = [1, 1]} : vector<8x128xf32> to vector<8x8xf32>
    %60 = arith.truncf %59 : vector<8x8xf32> to vector<8x8xbf16>
    %cst_17 = arith.constant dense<0.000000e+00> : vector<8x8xf32>
    %61 = tpu.matmul %56, %58, %cst_17 {dimension_numbers = #tpu.dot_dimension_numbers<[1], [1], [0], [0], [0, 0, 1, 0], [], []>} : vector<8x8xbf16>, vector<8x8xbf16>, vector<8x8xf32> -> vector<8x8xf32>
    %cst_18 = arith.constant -1.000000e+30 : f32
    %62 = vector.broadcast %cst_18 : f32 to vector<8x8xf32>
    %63 = arith.select %12, %61, %62 : vector<8x8xi1>, vector<8x8xf32>
    %cst_19 = arith.constant dense<0xFF800000> : vector<8xf32>
    %64 = vector.multi_reduction <maximumf>, %63, %cst_19 [1] : vector<8x8xf32> to vector<8xf32>
    %65 = vector.shape_cast %64 : vector<8xf32> to vector<8x1xf32>
    %66 = vector.broadcast %65 : vector<8x1xf32> to vector<8x8xf32>
    %67 = arith.subf %63, %66 : vector<8x8xf32>
    %68 = math.exp %67 : vector<8x8xf32>
    %cst_20 = arith.constant dense<0.000000e+00> : vector<8xf32>
    %69 = vector.multi_reduction <add>, %68, %cst_20 [1] : vector<8x8xf32> to vector<8xf32>
    %70 = vector.shape_cast %69 : vector<8xf32> to vector<8x1xf32>
    %71 = tpu.reciprocal %70 {approx = true} : vector<8x1xf32> -> vector<8x1xf32>
    %72 = vector.broadcast %71 : vector<8x1xf32> to vector<8x8xf32>
    %73 = arith.mulf %68, %72 : vector<8x8xf32>
    %74 = arith.truncf %73 : vector<8x8xf32> to vector<8x8xbf16>
    %cst_21 = arith.constant dense<0.000000e+00> : vector<8x8xf32>
    %75 = tpu.matmul %74, %60, %cst_21 {dimension_numbers = #tpu.dot_dimension_numbers<[1], [0], [0], [1], [0, 0, 1, 1], [], []>} : vector<8x8xbf16>, vector<8x8xbf16>, vector<8x8xf32> -> vector<8x8xf32>
    %76 = vector.extract_strided_slice %9 {offsets = [0, 24], sizes = [8, 8], strides = [1, 1]} : vector<8x128xf32> to vector<8x8xf32>
    %77 = arith.truncf %76 : vector<8x8xf32> to vector<8x8xbf16>
    %78 = vector.extract_strided_slice %9 {offsets = [0, 56], sizes = [8, 8], strides = [1, 1]} : vector<8x128xf32> to vector<8x8xf32>
    %79 = arith.truncf %78 : vector<8x8xf32> to vector<8x8xbf16>
    %80 = vector.extract_strided_slice %9 {offsets = [0, 88], sizes = [8, 8], strides = [1, 1]} : vector<8x128xf32> to vector<8x8xf32>
    %81 = arith.truncf %80 : vector<8x8xf32> to vector<8x8xbf16>
    %cst_22 = arith.constant dense<0.000000e+00> : vector<8x8xf32>
    %82 = tpu.matmul %77, %79, %cst_22 {dimension_numbers = #tpu.dot_dimension_numbers<[1], [1], [0], [0], [0, 0, 1, 0], [], []>} : vector<8x8xbf16>, vector<8x8xbf16>, vector<8x8xf32> -> vector<8x8xf32>
    %cst_23 = arith.constant -1.000000e+30 : f32
    %83 = vector.broadcast %cst_23 : f32 to vector<8x8xf32>
    %84 = arith.select %12, %82, %83 : vector<8x8xi1>, vector<8x8xf32>
    %cst_24 = arith.constant dense<0xFF800000> : vector<8xf32>
    %85 = vector.multi_reduction <maximumf>, %84, %cst_24 [1] : vector<8x8xf32> to vector<8xf32>
    %86 = vector.shape_cast %85 : vector<8xf32> to vector<8x1xf32>
    %87 = vector.broadcast %86 : vector<8x1xf32> to vector<8x8xf32>
    %88 = arith.subf %84, %87 : vector<8x8xf32>
    %89 = math.exp %88 : vector<8x8xf32>
    %cst_25 = arith.constant dense<0.000000e+00> : vector<8xf32>
    %90 = vector.multi_reduction <add>, %89, %cst_25 [1] : vector<8x8xf32> to vector<8xf32>
    %91 = vector.shape_cast %90 : vector<8xf32> to vector<8x1xf32>
    %92 = tpu.reciprocal %91 {approx = true} : vector<8x1xf32> -> vector<8x1xf32>
    %93 = vector.broadcast %92 : vector<8x1xf32> to vector<8x8xf32>
    %94 = arith.mulf %89, %93 : vector<8x8xf32>
    %95 = arith.truncf %94 : vector<8x8xf32> to vector<8x8xbf16>
    %cst_26 = arith.constant dense<0.000000e+00> : vector<8x8xf32>
    %96 = tpu.matmul %95, %81, %cst_26 {dimension_numbers = #tpu.dot_dimension_numbers<[1], [0], [0], [1], [0, 0, 1, 1], [], []>} : vector<8x8xbf16>, vector<8x8xbf16>, vector<8x8xf32> -> vector<8x8xf32>
    %97 = tpu.concatenate %33, %54, %75, %96 in 1 : vector<8x8xf32>, vector<8x8xf32>, vector<8x8xf32>, vector<8x8xf32> -> vector<8x32xf32>
    %98 = arith.truncf %97 : vector<8x32xf32> to vector<8x32xbf16>
    %c1 = arith.constant 1 : index
    %c0_27 = arith.constant 0 : index
    %c0_28 = arith.constant 0 : index
    %99 = vector.load %arg2[%c1, %c0_27, %c0_28] : memref<4x128x128xbf16, #tpu.memory_space<vmem>>, vector<1x32x128xbf16>
    %100 = vector.shape_cast %99 : vector<1x32x128xbf16> to vector<32x128xbf16>
    %cst_29 = arith.constant dense<0.000000e+00> : vector<8x128xf32>
    %101 = tpu.matmul %98, %100, %cst_29 {dimension_numbers = #tpu.dot_dimension_numbers<[1], [0], [0], [1], [0, 0, 1, 1], [], []>} : vector<8x32xbf16>, vector<32x128xbf16>, vector<8x128xf32> -> vector<8x128xf32>
    %102 = vector.extract_strided_slice %2 {offsets = [1, 0], sizes = [1, 128], strides = [1, 1]} : vector<8x128xf32> to vector<1x128xf32>
    %103 = vector.broadcast %102 : vector<1x128xf32> to vector<8x128xf32>
    %104 = arith.addf %101, %103 : vector<8x128xf32>
    %105 = arith.addf %1, %104 : vector<8x128xf32>
    %106 = arith.truncf %105 : vector<8x128xf32> to vector<8x128xbf16>
    %c2 = arith.constant 2 : index
    %c0_30 = arith.constant 0 : index
    %c0_31 = arith.constant 0 : index
    %107 = vector.load %arg2[%c2, %c0_30, %c0_31] : memref<4x128x128xbf16, #tpu.memory_space<vmem>>, vector<1x128x128xbf16>
    %108 = vector.shape_cast %107 : vector<1x128x128xbf16> to vector<128x128xbf16>
    %cst_32 = arith.constant dense<0.000000e+00> : vector<8x128xf32>
    %109 = tpu.matmul %106, %108, %cst_32 {dimension_numbers = #tpu.dot_dimension_numbers<[1], [0], [0], [1], [0, 0, 1, 1], [], []>} : vector<8x128xbf16>, vector<128x128xbf16>, vector<8x128xf32> -> vector<8x128xf32>
    %110 = vector.extract_strided_slice %2 {offsets = [2, 0], sizes = [1, 128], strides = [1, 1]} : vector<8x128xf32> to vector<1x128xf32>
    %111 = vector.broadcast %110 : vector<1x128xf32> to vector<8x128xf32>
    %112 = arith.addf %109, %111 : vector<8x128xf32>
    %113 = arith.negf %112 : vector<8x128xf32>
    %114 = math.exp %113 : vector<8x128xf32>
    %cst_33 = arith.constant 1.000000e+00 : f32
    %115 = vector.broadcast %cst_33 : f32 to vector<8x128xf32>
    %116 = arith.addf %115, %114 : vector<8x128xf32>
    %117 = arith.divf %115, %116 : vector<8x128xf32>
    %118 = arith.mulf %112, %117 : vector<8x128xf32>
    %119 = arith.truncf %118 : vector<8x128xf32> to vector<8x128xbf16>
    %c3 = arith.constant 3 : index
    %c0_34 = arith.constant 0 : index
    %c0_35 = arith.constant 0 : index
    %120 = vector.load %arg2[%c3, %c0_34, %c0_35] : memref<4x128x128xbf16, #tpu.memory_space<vmem>>, vector<1x128x128xbf16>
    %121 = vector.shape_cast %120 : vector<1x128x128xbf16> to vector<128x128xbf16>
    %cst_36 = arith.constant dense<0.000000e+00> : vector<8x128xf32>
    %122 = tpu.matmul %119, %121, %cst_36 {dimension_numbers = #tpu.dot_dimension_numbers<[1], [0], [0], [1], [0, 0, 1, 1], [], []>} : vector<8x128xbf16>, vector<128x128xbf16>, vector<8x128xf32> -> vector<8x128xf32>
    %123 = vector.extract_strided_slice %2 {offsets = [3, 0], sizes = [1, 128], strides = [1, 1]} : vector<8x128xf32> to vector<1x128xf32>
    %124 = vector.broadcast %123 : vector<1x128xf32> to vector<8x128xf32>
    %125 = arith.addf %122, %124 : vector<8x128xf32>
    %126 = arith.addf %105, %125 : vector<8x128xf32>
    %c0_37 = arith.constant 0 : index
    %c0_38 = arith.constant 0 : index
    %c0_39 = arith.constant 0 : index
    %127 = vector.load %arg4[%c0_37, %c0_38, %c0_39] : memref<1x8x128xf32, #tpu.memory_space<vmem>>, vector<1x8x128xf32>
    %128 = vector.shape_cast %127 : vector<1x8x128xf32> to vector<8x128xf32>
    %129 = vector.shape_cast %126 : vector<8x128xf32> to vector<1x8x128xf32>
    tpu.vector_store %arg4[%c0_37, %c0_38, %c0_39], %129 {strides = array<i32>} : memref<1x8x128xf32, #tpu.memory_space<vmem>>, vector<1x8x128xf32>,
    return
  }
  func.func @transform_0(%arg0: i32) -> (i32, i32, i32) {
    %c0_i32 = arith.constant 0 : i32
    %c0_i32_0 = arith.constant 0 : i32
    %c0_i32_1 = arith.constant 0 : i32
    return %arg0, %c0_i32, %c0_i32_0 : i32, i32, i32
  }
  func.func @transform_1(%arg0: i32) -> (i32, i32, i32) {
    %c0_i32 = arith.constant 0 : i32
    %c0_i32_0 = arith.constant 0 : i32
    %c0_i32_1 = arith.constant 0 : i32
    %c0_i32_2 = arith.constant 0 : i32
    return %c0_i32, %c0_i32_0, %c0_i32_1 : i32, i32, i32
  }
  func.func @transform_2(%arg0: i32) -> (i32, i32) {
    %c0_i32 = arith.constant 0 : i32
    %c0_i32_0 = arith.constant 0 : i32
    %c0_i32_1 = arith.constant 0 : i32
    return %c0_i32, %c0_i32_0 : i32, i32
  }
  func.func @transform_3(%arg0: i32) -> (i32, i32, i32) {
    %c0_i32 = arith.constant 0 : i32
    %c0_i32_0 = arith.constant 0 : i32
    %c0_i32_1 = arith.constant 0 : i32
    return %arg0, %c0_i32, %c0_i32_0 : i32, i32, i32
  }
}

</mosaic_0001>

<llo_original>
// kernel: tpu_custom_call.1
$region0: #{tpu_custom_call.1}
  #allocation0 [shape = 'u32[]', space=smem, size = 0x4, offset = 0x4, fixed_abs, tag = 'smem constant byte address 0x4 - core index']
  #allocation1 [shape = 'u32[72,128]{1,0:T(1,128)}', space=vmem, size = 0x9000, scoped, tag = 'internal scratch']
  %s0 = inlined_call_operand.hbm [shape: f32[2,8,128], index: 0, kind: input, shape index: {}]
  %s1 = inlined_call_operand.hbm [shape: bf16[4,128,128], index: 1, kind: input, shape index: {}]
  %s2 = inlined_call_operand.hbm [shape: f32[8,128], index: 2, kind: input, shape index: {}]
  %s3 = inlined_call_operand.hbm [shape: f32[2,8,128], index: 3, kind: output, shape index: {}]
  %s4 = sld [smem:[#allocation0]]
  $region57: #{tpu_custom_call.1} parent=0
    _
  %s6 = ssub.s32 1, %s4
  %s7 = scalar_select 0, %s6, %s4
  $region1: #{tpu_custom_call.1} parent=0
    #allocation2 [shape = 'u8[8192]{0}', space=vmem, size = 0x2000, scoped, tag = 'input window, operand 0']
    #allocation3 [shape = 's32[2]{0}', space=sflag, size = 0x8, scoped, tag = 'scoped memory for tpu_custom_call.1']
    #allocation4 [shape = 's32[2]{0}', space=sflag, size = 0x8, scoped, tag = 'scoped memory for tpu_custom_call.1']
    #allocation5 [shape = 'u8[131072]{0}', space=vmem, size = 0x20000, scoped, tag = 'input window, operand 1, single buffered']
    #allocation6 [shape = 's32[1]{0}', space=sflag, size = 0x4, scoped, tag = 'scoped memory for tpu_custom_call.1']
    #allocation7 [shape = 'u8[4096]{0}', space=vmem, size = 0x1000, scoped, tag = 'input window, operand 2, single buffered']
    #allocation8 [shape = 'u8[8192]{0}', space=vmem, size = 0x2000, scoped, tag = 'output window, operand 0']
    %8 = vsyncpa [#allocation3], 0
    %s9 = scalar_lea.sflag [#allocation3], 1
    %10 = vsyncpa %s9, 0
    %11 = vsyncpa [#allocation6], 0
    %12 = vsyncpa [#allocation4], 0
    %s13 = scalar_lea.sflag [#allocation4], 1
    %14 = vsyncpa %s13, 0
    loop: start=0, step=1, limit=4
    $region2: #{tpu_custom_call.1} parent=1 // loop_pre_header
      _
    $region3: #{tpu_custom_call.1} parent=1 // loop_header
      %s16 = sphi 0, %s20
      %p17 = scmp.ge.s32.totalorder %s16, 4
      %s26 = sphi 0, %s28
      %s29 = sphi 0, %s26
      %s30 = sphi 0, %s29
      %s46 = sphi 0, %s30
      %s50 = sphi 0, %s50
      %s52 = sphi 0, %s50
      %s53 = sphi 0, %s52
      %s67 = sphi 0, %s53
      %s71 = sphi 0, %s71
      %s73 = sphi 0, %s71
      %s74 = sphi 0, %s73
      %s88 = sphi 0, %s74
      %s94 = sphi 0, %s96
      %s97 = sphi 0, %s94
      %s98 = sphi 0, %s97
      %s114 = sphi 0, %s98
    $region4: #{tpu_custom_call.1} parent=1 // loop_header_branch
      %19 = sbr.rel (%p17) target = $region8
    $region5: #{tpu_custom_call.1} parent=1 // loop_body
      %s21 = ssub.s32 %s16, 1
      %s22 = ssub.s32 %s16, 2
      %s23 = sadd.s32 %s16, 1
      %s24 = ssub.s32 %s16, %s23
      %p25 = scmp.eq.s32.totalorder %s24, 0
      %s27 = sadd.s32 %s26, 1
      %s28 = scalar_select %p25, %s26, %s27
      %p31 = pneg %p25
      %p32 = scmp.eq.s32.totalorder %s16, 1
      %p33 = por %p31, %p32
      %p34 = scmp.ne.s32.totalorder %s26, %s29
      %p35 = scmp.eq.s32.totalorder %s16, 0
      %p36 = por %p34, %p35
      %p37 = scmp.ne.s32.totalorder %s26, %s29
      %p38 = scmp.eq.s32.totalorder %s21, 1
      %p39 = por %p37, %p38
      %p40 = scmp.ne.s32.totalorder %s29, %s30
      %p41 = scmp.eq.s32.totalorder %s21, 0
      %p42 = por %p40, %p41
      %p43 = scmp.ne.s32.totalorder %s29, %s30
      %p44 = scmp.eq.s32.totalorder %s22, 1
      %p45 = por %p43, %p44
      %p47 = scmp.ne.s32.totalorder %s30, %s46
      %p48 = scmp.eq.s32.totalorder %s22, 0
      %p49 = por %p47, %p48
      %s51 = sadd.s32 %s50, 1
      %p54 = scmp.eq.s32.totalorder %s16, 1
      %p55 = scmp.ne.s32.totalorder %s50, %s52
      %p56 = scmp.eq.s32.totalorder %s16, 0
      %p57 = por %p55, %p56
      %p58 = scmp.ne.s32.totalorder %s50, %s52
      %p59 = scmp.eq.s32.totalorder %s21, 1
      %p60 = por %p58, %p59
      %p61 = scmp.ne.s32.totalorder %s52, %s53
      %p62 = scmp.eq.s32.totalorder %s21, 0
      %p63 = por %p61, %p62
      %p64 = scmp.ne.s32.totalorder %s52, %s53
      %p65 = scmp.eq.s32.totalorder %s22, 1
      %p66 = por %p64, %p65
      %p68 = scmp.ne.s32.totalorder %s53, %s67
      %p69 = scmp.eq.s32.totalorder %s22, 0
      %p70 = por %p68, %p69
      %s72 = sadd.s32 %s71, 1
      %p75 = scmp.eq.s32.totalorder %s16, 1
      %p76 = scmp.ne.s32.totalorder %s71, %s73
      %p77 = scmp.eq.s32.totalorder %s16, 0
      %p78 = por %p76, %p77
      %p79 = scmp.ne.s32.totalorder %s71, %s73
      %p80 = scmp.eq.s32.totalorder %s21, 1
      %p81 = por %p79, %p80
      %p82 = scmp.ne.s32.totalorder %s73, %s74
      %p83 = scmp.eq.s32.totalorder %s21, 0
      %p84 = por %p82, %p83
      %p85 = scmp.ne.s32.totalorder %s73, %s74
      %p86 = scmp.eq.s32.totalorder %s22, 1
      %p87 = por %p85, %p86
      %p89 = scmp.ne.s32.totalorder %s74, %s88
      %p90 = scmp.eq.s32.totalorder %s22, 0
      %p91 = por %p89, %p90
      %s92 = ssub.s32 %s16, %s23
      %p93 = scmp.eq.s32.totalorder %s92, 0
      %s95 = sadd.s32 %s94, 1
      %s96 = scalar_select %p93, %s94, %s95
      %p99 = pneg %p93
      %p100 = scmp.eq.s32.totalorder %s16, 1
      %p101 = por %p99, %p100
      %p102 = scmp.ne.s32.totalorder %s94, %s97
      %p103 = scmp.eq.s32.totalorder %s16, 0
      %p104 = por %p102, %p103
      %p105 = scmp.ne.s32.totalorder %s94, %s97
      %p106 = scmp.eq.s32.totalorder %s21, 1
      %p107 = por %p105, %p106
      %p108 = scmp.ne.s32.totalorder %s97, %s98
      %p109 = scmp.eq.s32.totalorder %s21, 0
      %p110 = por %p108, %p109
      %p111 = scmp.ne.s32.totalorder %s97, %s98
      %p112 = scmp.eq.s32.totalorder %s22, 1
      %p113 = por %p111, %p112
      %p115 = scmp.ne.s32.totalorder %s98, %s114
      %p116 = scmp.eq.s32.totalorder %s22, 0
      %p117 = por %p115, %p116
      %p118 = scmp.le.s32.totalorder 1, %s16
      %p119 = scmp.lt.s32.totalorder %s16, 3
      %p120 = pnand %p118, %p119
      %p121 = pneg %p120
      // Predicated region
      $region9: #{tpu_custom_call.1} parent=5 // pred_check
        _
      $region10: #{tpu_custom_call.1} parent=5 // pred_check_branch
        %123 = sbr.rel (%p120) target = $region12
      $region11: #{tpu_custom_call.1} parent=5 // pred_region
        %s124 = ssub.s32 %s16, 1
        // Predicated region
        $region13: #{tpu_custom_call.1} parent=11 // pred_check
          %p125 = pneg %p63
        $region14: #{tpu_custom_call.1} parent=11 // pred_check_branch
          %127 = sbr.rel (%p125) target = $region16
        $region15: #{tpu_custom_call.1} parent=11 // pred_region
          %129 = vsyncadd [#allocation6], 0
          %s130 = sshll.u32 %s1, 4
          %s131 = int_to_ptr.hbm [resolvable:$true] %s130
          %s132 = sshll.u32 [#allocation5], 4
          %s133 = int_to_ptr.vmem [resolvable:$true] %s132
          %138 = dma.hbm_to_vmem [thread:$0]  %s131, 4096, %s133, [#allocation6], 64, 64, 4
        $region16: #{tpu_custom_call.1} parent=11 // pred_fallthru
          _
        // Predicated region
        $region17: #{tpu_custom_call.1} parent=11 // pred_check
          %p139 = pneg %p84
        $region18: #{tpu_custom_call.1} parent=11 // pred_check_branch
          %141 = sbr.rel (%p139) target = $region20
        $region19: #{tpu_custom_call.1} parent=11 // pred_region
          %143 = vsyncadd [#allocation6], 0
          %s145 = sshll.u32 %s2, 4
          %s146 = int_to_ptr.hbm [resolvable:$true] %s145
          %s147 = sshll.u32 [#allocation7], 4
          %s148 = int_to_ptr.vmem [resolvable:$true] %s147
          %150 = dma.hbm_to_vmem [thread:$0]  %s146, 128, %s148, [#allocation6]
        $region20: #{tpu_custom_call.1} parent=11 // pred_fallthru
          _
      $region12: #{tpu_custom_call.1} parent=5 // pred_fallthru
        _
      %p151 = scmp.lt.s32.totalorder %s16, 2
      // Predicated region
      $region21: #{tpu_custom_call.1} parent=5 // pred_check
        %p152 = pneg %p151
      $region22: #{tpu_custom_call.1} parent=5 // pred_check_branch
        %154 = sbr.rel (%p152) target = $region24
      $region23: #{tpu_custom_call.1} parent=5 // pred_region
        // Predicated region
        $region25: #{tpu_custom_call.1} parent=23 // pred_check
          %p155 = pneg %p36
        $region26: #{tpu_custom_call.1} parent=23 // pred_check_branch
          %157 = sbr.rel (%p155) target = $region28
        $region27: #{tpu_custom_call.1} parent=23 // pred_region
          %s158 = sand.u32 %s26, 1
          %s159 = scalar_lea.sflag [#allocation3], %s158
          %s160 = sand.u32 %s26, 1
          %s161 = smul.addr %s160, 8
          %s162 = scalar_lea.vmem [#allocation2], %s161
          %164 = vsyncadd %s159, 0
          %s165 = smul.addr %s16, 8
          %s166 = scalar_lea.hbm %s0, %s165
          %s168 = sshll.u32 %s166, 4
          %s169 = int_to_ptr.hbm [resolvable:$true] %s168
          %s170 = sshll.u32 %s162, 4
          %s171 = int_to_ptr.vmem [resolvable:$true] %s170
          %173 = dma.hbm_to_vmem [thread:$0]  %s169, 128, %s171, %s159
        $region28: #{tpu_custom_call.1} parent=23 // pred_fallthru
          _
      $region24: #{tpu_custom_call.1} parent=5 // pred_fallthru
        _
      %p174 = scmp.le.s32.totalorder 1, %s16
      %p175 = scmp.lt.s32.totalorder %s16, 3
      %p176 = pnand %p174, %p175
      %p177 = pneg %p176
      // Predicated region
      $region29: #{tpu_custom_call.1} parent=5 // pred_check
        _
      $region30: #{tpu_custom_call.1} parent=5 // pred_check_branch
        %179 = sbr.rel (%p176) target = $region32
      $region31: #{tpu_custom_call.1} parent=5 // pred_region
        %s180 = ssub.s32 %s16, 1
        %s181 = sand.u32 %s29, 1
        %s182 = scalar_lea.sflag [#allocation3], %s181
        %s183 = sand.u32 %s29, 1
        %s184 = smul.addr %s183, 8
        %s185 = scalar_lea.vmem [#allocation2], %s184
        // Predicated region
        $region33: #{tpu_custom_call.1} parent=31 // pred_check
          %p186 = pneg %p42
        $region34: #{tpu_custom_call.1} parent=31 // pred_check_branch
          %188 = sbr.rel (%p186) target = $region36
        $region35: #{tpu_custom_call.1} parent=31 // pred_region
          %190 = dma.done %s182, 128
        $region36: #{tpu_custom_call.1} parent=31 // pred_fallthru
          _
        // Predicated region
        $region37: #{tpu_custom_call.1} parent=31 // pred_check
          %p191 = pneg %p63
        $region38: #{tpu_custom_call.1} parent=31 // pred_check_branch
          %193 = sbr.rel (%p191) target = $region40
        $region39: #{tpu_custom_call.1} parent=31 // pred_region
          %195 = dma.done [#allocation6], 4096
        $region40: #{tpu_custom_call.1} parent=31 // pred_fallthru
          _
        // Predicated region
        $region41: #{tpu_custom_call.1} parent=31 // pred_check
          %p196 = pneg %p84
        $region42: #{tpu_custom_call.1} parent=31 // pred_check_branch
          %198 = sbr.rel (%p196) target = $region44
        $region43: #{tpu_custom_call.1} parent=31 // pred_region
          %200 = dma.done [#allocation6], 128
        $region44: #{tpu_custom_call.1} parent=31 // pred_fallthru
          _
        %s201 = sand.u32 %s29, 1
        %s202 = scalar_lea.sflag [#allocation3], %s201
        %s203 = sand.u32 %s29, 1
        %s204 = smul.addr %s203, 8
        %s205 = scalar_lea.vmem [#allocation2], %s204
        %p206 = pneg %p42
        %p207 = pneg %p39
        %p208 = pneg %p63
        %p209 = pneg %p60
        %p210 = pneg %p84
        %p211 = pneg %p81
        %p212 = pneg %p110
        %p213 = pneg %p107
        %s214 = sand.u32 %s97, 1
        %s215 = scalar_lea.sflag [#allocation4], %s214
        %s216 = sand.u32 %s97, 1
        %s217 = smul.addr %s216, 8
        %s218 = scalar_lea.vmem [#allocation8], %s217
        %v220 = vld [vmem:[%s185] sm:$0xff]
        %v221 = vld [vmem:[#allocation7] sm:$0xff]
        %v222 = vpack.c.bf16 %v220, %v220
        %v223 = vld [vmem:[#allocation5] sm:$0xf]
        %v224 = vld [vmem:[#allocation5 + $0x4] sm:$0xf]
        %v225 = vld [vmem:[#allocation5 + $0x8] sm:$0xf]
        %v226 = vld [vmem:[#allocation5 + $0xc] sm:$0xf]
        %v227 = vld [vmem:[#allocation5 + $0x10] sm:$0xf]
        %v228 = vld [vmem:[#allocation5 + $0x14] sm:$0xf]
        %v229 = vld [vmem:[#allocation5 + $0x18] sm:$0xf]
        %v230 = vld [vmem:[#allocation5 + $0x1c] sm:$0xf]
        %v231 = vld [vmem:[#allocation5 + $0x20] sm:$0xf]
        %v232 = vld [vmem:[#allocation5 + $0x24] sm:$0xf]
        %v233 = vld [vmem:[#allocation5 + $0x28] sm:$0xf]
        %v234 = vld [vmem:[#allocation5 + $0x2c] sm:$0xf]
        %v235 = vld [vmem:[#allocation5 + $0x30] sm:$0xf]
        %v236 = vld [vmem:[#allocation5 + $0x34] sm:$0xf]
        %v237 = vld [vmem:[#allocation5 + $0x38] sm:$0xf]
        %v238 = vld [vmem:[#allocation5 + $0x3c] sm:$0xf]
        %v239 = vperm.slane %v221, 0
        %v256 = vunpack.c.l.b16 %v223
        %v257 = vunpack.c.l.b16 %v224
        %v258 = vunpack.c.l.b16 %v225
        %v259 = vunpack.c.l.b16 %v226
        %v260 = vunpack.c.l.b16 %v227
        %v261 = vunpack.c.l.b16 %v228
        %v262 = vunpack.c.l.b16 %v229
        %v263 = vunpack.c.l.b16 %v230
        %v264 = vunpack.c.l.b16 %v231
        %v265 = vunpack.c.l.b16 %v232
        %v266 = vunpack.c.l.b16 %v233
        %v267 = vunpack.c.l.b16 %v234
        %v268 = vunpack.c.l.b16 %v235
        %v269 = vunpack.c.l.b16 %v236
        %v270 = vunpack.c.l.b16 %v237
        %v271 = vunpack.c.l.b16 %v238
        %v272 = vpack.c.b16 %v257, %v256
        %v273 = vpack.c.b16 %v259, %v258
        %v274 = vpack.c.b16 %v261, %v260
        %v275 = vpack.c.b16 %v263, %v262
        %v276 = vpack.c.b16 %v265, %v264
        %v277 = vpack.c.b16 %v267, %v266
        %v278 = vpack.c.b16 %v269, %v268
        %v279 = vpack.c.b16 %v271, %v270
        %288 = vmatpush.bf16.msra.mxu0 %v279
        %289 = vmatpush.bf16.msra.mxu0 %v278
        %290 = vmatpush.bf16.msra.mxu0 %v277
        %291 = vmatpush.bf16.msra.mxu0 %v276
        %292 = vmatpush.bf16.msra.mxu0 %v275
        %293 = vmatpush.bf16.msra.mxu0 %v274
        %294 = vmatpush.bf16.msra.mxu0 %v273
        %295 = vmatpush.bf16.msra.mxu0 %v272
        %296 = vmatmul.bf16.gmra.mxu0 %v222
        %v297 = vpop.f32.mrf.mxu0
        %v298 = vadd.f32 %v239, %v297
        %v299 = vpop.f32.mrf.mxu0
        %300 = vdwg.mxu0
        %v301 = vlaneseq
        %v302 = vshrl.u32 %v301, 7
        %v303 = vlaneseq
        %v304 = vand.u32 %v303, 127
        %vm305 = vcmp.le.s32.totalorder %v304, %v302
        %v306 = vpack.c.bf16 %v298, %v298
        %308 = vrot.lane.b32.xlu0 %v306, 96
        %v309 = vpop.permute.xlu0 %308
        %vm310 = vcmask 64512
        %v312 = vsel %vm310, %v306, 0
        %v315 = vsel %vm310, %v309, 0
        %317 = vmatpush.bf16.xpose.msra.mxu0 0
        %318 = vmatpush.bf16.xpose.msra.mxu0 0
        %319 = vmatpush.bf16.xpose.msra.mxu0 0
        %320 = vmatpush.bf16.xpose.msra.mxu0 0
        %321 = vmatpush.bf16.xpose.msra.mxu0 0
        %322 = vmatpush.bf16.xpose.msra.mxu0 0
        %323 = vmatpush.bf16.xpose.msra.mxu0 0
        %324 = vmatpush.bf16.xpose.msra.mxu0 %v315
        %325 = vmatmul.bf16.gmra.mxu0 %v312
        %v326 = vpop.f32.mrf.mxu0
        %v327 = vadd.f32 0.0, %v326
        %v328 = vpop.f32.mrf.mxu0
        %329 = vdwg.mxu0
        %v330 = vsel %vm305, %v327, -1e+30
        %v331 = vsel %vm310, %v330, -inf
        %332 = vmax.xlane.f32.xlu0 %v331
        %v333 = vpop.xlane.xlu0 %332
        %v334 = vsub.f32 %v330, %v333
        %v335 = vmul.f32 %v334, 1.442695
        %v336 = vpow.pop %v335
        %v337 = vsel %vm310, %v336, 0.0
        %338 = vadd.xlane.f32.xlu0 %v337
        %v339 = vpop.xlane.xlu0 %338
        %v340 = vrcp.pop %v339
        %v341 = vmul.f32 %v336, %v340
        %v342 = vpack.c.bf16 %v341, %v341
        %343 = vrot.lane.b32.xlu0 %v306, 64
        %v344 = vpop.permute.xlu0 %343
        %v346 = vsel %vm310, %v342, 0
        %vm348 = vcmask 1043456
        %v350 = vsel %vm348, %v344, 0
        %352 = vmatpush.bf16.msra.mxu0 0
        %353 = vmatpush.bf16.msra.mxu0 0
        %354 = vmatpush.bf16.msra.mxu0 0
        %355 = vmatpush.bf16.msra.mxu0 0
        %356 = vmatpush.bf16.msra.mxu0 0
        %357 = vmatpush.bf16.msra.mxu0 0
        %358 = vmatpush.bf16.msra.mxu0 0
        %359 = vmatpush.bf16.msra.mxu0 %v350
        %360 = vmatmul.bf16.gmra.mxu0 %v346
        %v361 = vpop.f32.mrf.mxu0
        %v362 = vadd.f32 0.0, %v361
        %v363 = vpop.f32.mrf.mxu0
        %364 = vdwg.mxu0
        %365 = vrot.lane.b32.xlu0 %v306, 120
        %v366 = vpop.permute.xlu0 %365
        %367 = vrot.lane.b32.xlu0 %v306, 88
        %v368 = vpop.permute.xlu0 %367
        %v370 = vsel %vm310, %v366, 0
        %v373 = vsel %vm310, %v368, 0
        %375 = vmatpush.bf16.xpose.msra.mxu0 0
        %376 = vmatpush.bf16.xpose.msra.mxu0 0
        %377 = vmatpush.bf16.xpose.msra.mxu0 0
        %378 = vmatpush.bf16.xpose.msra.mxu0 0
        %379 = vmatpush.bf16.xpose.msra.mxu0 0
        %380 = vmatpush.bf16.xpose.msra.mxu0 0
        %381 = vmatpush.bf16.xpose.msra.mxu0 0
        %382 = vmatpush.bf16.xpose.msra.mxu0 %v373
        %383 = vmatmul.bf16.gmra.mxu0 %v370
        %v384 = vpop.f32.mrf.mxu0
        %v385 = vadd.f32 0.0, %v384
        %v386 = vpop.f32.mrf.mxu0
        %387 = vdwg.mxu0
        %v388 = vsel %vm305, %v385, -1e+30
        %v389 = vsel %vm310, %v388, -inf
        %390 = vmax.xlane.f32.xlu0 %v389
        %v391 = vpop.xlane.xlu0 %390
        %v392 = vsub.f32 %v388, %v391
        %v393 = vmul.f32 %v392, 1.442695
        %v394 = vpow.pop %v393
        %v395 = vsel %vm310, %v394, 0.0
        %396 = vadd.xlane.f32.xlu0 %v395
        %v397 = vpop.xlane.xlu0 %396
        %v398 = vrcp.pop %v397
        %v399 = vmul.f32 %v394, %v398
        %v400 = vpack.c.bf16 %v399, %v399
        %401 = vrot.lane.b32.xlu0 %v306, 56
        %v402 = vpop.permute.xlu0 %401
        %v404 = vsel %vm310, %v400, 0
        %v407 = vsel %vm348, %v402, 0
        %409 = vmatpush.bf16.msra.mxu0 0
        %410 = vmatpush.bf16.msra.mxu0 0
        %411 = vmatpush.bf16.msra.mxu0 0
        %412 = vmatpush.bf16.msra.mxu0 0
        %413 = vmatpush.bf16.msra.mxu0 0
        %414 = vmatpush.bf16.msra.mxu0 0
        %415 = vmatpush.bf16.msra.mxu0 0
        %416 = vmatpush.bf16.msra.mxu0 %v407
        %417 = vmatmul.bf16.gmra.mxu0 %v404
        %v418 = vpop.f32.mrf.mxu0
        %v419 = vadd.f32 0.0, %v418
        %v420 = vpop.f32.mrf.mxu0
        %421 = vdwg.mxu0
        %422 = vrot.lane.b32.xlu0 %v306, 112
        %v423 = vpop.permute.xlu0 %422
        %424 = vrot.lane.b32.xlu0 %v306, 80
        %v425 = vpop.permute.xlu0 %424
        %v427 = vsel %vm310, %v423, 0
        %v430 = vsel %vm310, %v425, 0
        %432 = vmatpush.bf16.xpose.msra.mxu0 0
        %433 = vmatpush.bf16.xpose.msra.mxu0 0
        %434 = vmatpush.bf16.xpose.msra.mxu0 0
        %435 = vmatpush.bf16.xpose.msra.mxu0 0
        %436 = vmatpush.bf16.xpose.msra.mxu0 0
        %437 = vmatpush.bf16.xpose.msra.mxu0 0
        %438 = vmatpush.bf16.xpose.msra.mxu0 0
        %439 = vmatpush.bf16.xpose.msra.mxu0 %v430
        %440 = vmatmul.bf16.gmra.mxu0 %v427
        %v441 = vpop.f32.mrf.mxu0
        %v442 = vadd.f32 0.0, %v441
        %v443 = vpop.f32.mrf.mxu0
        %444 = vdwg.mxu0
        %v445 = vsel %vm305, %v442, -1e+30
        %v446 = vsel %vm310, %v445, -inf
        %447 = vmax.xlane.f32.xlu0 %v446
        %v448 = vpop.xlane.xlu0 %447
        %v449 = vsub.f32 %v445, %v448
        %v450 = vmul.f32 %v449, 1.442695
        %v451 = vpow.pop %v450
        %v452 = vsel %vm310, %v451, 0.0
        %453 = vadd.xlane.f32.xlu0 %v452
        %v454 = vpop.xlane.xlu0 %453
        %v455 = vrcp.pop %v454
        %v456 = vmul.f32 %v451, %v455
        %v457 = vpack.c.bf16 %v456, %v456
        %458 = vrot.lane.b32.xlu0 %v306, 48
        %v459 = vpop.permute.xlu0 %458
        %v461 = vsel %vm310, %v457, 0
        %v464 = vsel %vm348, %v459, 0
        %466 = vmatpush.bf16.msra.mxu0 0
        %467 = vmatpush.bf16.msra.mxu0 0
        %468 = vmatpush.bf16.msra.mxu0 0
        %469 = vmatpush.bf16.msra.mxu0 0
        %470 = vmatpush.bf16.msra.mxu0 0
        %471 = vmatpush.bf16.msra.mxu0 0
        %472 = vmatpush.bf16.msra.mxu0 0
        %473 = vmatpush.bf16.msra.mxu0 %v464
        %474 = vmatmul.bf16.gmra.mxu0 %v461
        %v475 = vpop.f32.mrf.mxu0
        %v476 = vadd.f32 0.0, %v475
        %v477 = vpop.f32.mrf.mxu0
        %478 = vdwg.mxu0
        %479 = vrot.lane.b32.xlu0 %v306, 104
        %v480 = vpop.permute.xlu0 %479
        %481 = vrot.lane.b32.xlu0 %v306, 72
        %v482 = vpop.permute.xlu0 %481
        %v484 = vsel %vm310, %v480, 0
        %v487 = vsel %vm310, %v482, 0
        %489 = vmatpush.bf16.xpose.msra.mxu0 0
        %490 = vmatpush.bf16.xpose.msra.mxu0 0
        %491 = vmatpush.bf16.xpose.msra.mxu0 0
        %492 = vmatpush.bf16.xpose.msra.mxu0 0
        %493 = vmatpush.bf16.xpose.msra.mxu0 0
        %494 = vmatpush.bf16.xpose.msra.mxu0 0
        %495 = vmatpush.bf16.xpose.msra.mxu0 0
        %496 = vmatpush.bf16.xpose.msra.mxu0 %v487
        %497 = vmatmul.bf16.gmra.mxu0 %v484
        %v498 = vpop.f32.mrf.mxu0
        %v499 = vadd.f32 0.0, %v498
        %v500 = vpop.f32.mrf.mxu0
        %501 = vdwg.mxu0
        %v502 = vsel %vm305, %v499, -1e+30
        %v503 = vsel %vm310, %v502, -inf
        %504 = vmax.xlane.f32.xlu0 %v503
        %v505 = vpop.xlane.xlu0 %504
        %v506 = vsub.f32 %v502, %v505
        %v507 = vmul.f32 %v506, 1.442695
        %v508 = vpow.pop %v507
        %v509 = vsel %vm310, %v508, 0.0
        %510 = vadd.xlane.f32.xlu0 %v509
        %v511 = vpop.xlane.xlu0 %510
        %v512 = vrcp.pop %v511
        %v513 = vmul.f32 %v508, %v512
        %v514 = vpack.c.bf16 %v513, %v513
        %515 = vrot.lane.b32.xlu0 %v306, 40
        %v516 = vpop.permute.xlu0 %515
        %v518 = vsel %vm310, %v514, 0
        %v521 = vsel %vm348, %v516, 0
        %523 = vmatpush.bf16.msra.mxu0 0
        %524 = vmatpush.bf16.msra.mxu0 0
        %525 = vmatpush.bf16.msra.mxu0 0
        %526 = vmatpush.bf16.msra.mxu0 0
        %527 = vmatpush.bf16.msra.mxu0 0
        %528 = vmatpush.bf16.msra.mxu0 0
        %529 = vmatpush.bf16.msra.mxu0 0
        %530 = vmatpush.bf16.msra.mxu0 %v521
        %531 = vmatmul.bf16.gmra.mxu0 %v518
        %v532 = vpop.f32.mrf.mxu0
        %v533 = vadd.f32 0.0, %v532
        %v534 = vpop.f32.mrf.mxu0
        %535 = vdwg.mxu0
        %537 = vrot.lane.b32.xlu0 %v419, 8
        %v538 = vpop.permute.xlu0 %537
        %541 = vrot.lane.b32.xlu0 %v476, 16
        %v542 = vpop.permute.xlu0 %541
        %545 = vrot.lane.b32.xlu0 %v533, 24
        %v546 = vpop.permute.xlu0 %545
        %v548 = vsel %vm310, %v362, %v538
        %vm549 = vcmask 130048
        %v550 = vsel %vm549, %v548, %v542
        %vm551 = vcmask 195584
        %v552 = vsel %vm551, %v550, %v546
        %v553 = vpack.c.bf16 %v552, %v552
        %s554 = scalar_lea.vmem [#allocation5], 64
        %v555 = vld [vmem:[%s554] sm:$0xf]
        %v556 = vld [vmem:[%s554 + $0x4] sm:$0xf]
        %v557 = vld [vmem:[%s554 + $0x8] sm:$0xf]
        %v558 = vld [vmem:[%s554 + $0xc] sm:$0xf]
        %v559 = vperm.slane %v221, 1
        %v564 = vunpack.c.l.b16 %v555
        %v565 = vunpack.c.l.b16 %v556
        %v566 = vunpack.c.l.b16 %v557
        %v567 = vunpack.c.l.b16 %v558
        %v568 = vpack.c.b16 %v565, %v564
        %v569 = vpack.c.b16 %v567, %v566
        %vm572 = vcmask 261120
        %v574 = vsel %vm572, %v553, 0
        %576 = vmatpush.bf16.msra.mxu0 0
        %577 = vmatpush.bf16.msra.mxu0 0
        %578 = vmatpush.bf16.msra.mxu0 0
        %579 = vmatpush.bf16.msra.mxu0 0
        %580 = vmatpush.bf16.msra.mxu0 0
        %581 = vmatpush.bf16.msra.mxu0 0
        %582 = vmatpush.bf16.msra.mxu0 %v569
        %583 = vmatpush.bf16.msra.mxu0 %v568
        %584 = vmatmul.bf16.gmra.mxu0 %v574
        %v585 = vpop.f32.mrf.mxu0
        %v586 = vadd.f32 %v559, %v585
        %v587 = vpop.f32.mrf.mxu0
        %588 = vdwg.mxu0
        %v589 = vadd.f32 %v220, %v586
        %v590 = vpack.c.bf16 %v589, %v589
        %s591 = scalar_lea.vmem [#allocation5], 128
        %v592 = vld [vmem:[%s591] sm:$0xf]
        %v593 = vld [vmem:[%s591 + $0x4] sm:$0xf]
        %v594 = vld [vmem:[%s591 + $0x8] sm:$0xf]
        %v595 = vld [vmem:[%s591 + $0xc] sm:$0xf]
        %v596 = vld [vmem:[%s591 + $0x10] sm:$0xf]
        %v597 = vld [vmem:[%s591 + $0x14] sm:$0xf]
        %v598 = vld [vmem:[%s591 + $0x18] sm:$0xf]
        %v599 = vld [vmem:[%s591 + $0x1c] sm:$0xf]
        %v600 = vld [vmem:[%s591 + $0x20] sm:$0xf]
        %v601 = vld [vmem:[%s591 + $0x24] sm:$0xf]
        %v602 = vld [vmem:[%s591 + $0x28] sm:$0xf]
        %v603 = vld [vmem:[%s591 + $0x2c] sm:$0xf]
        %v604 = vld [vmem:[%s591 + $0x30] sm:$0xf]
        %v605 = vld [vmem:[%s591 + $0x34] sm:$0xf]
        %v606 = vld [vmem:[%s591 + $0x38] sm:$0xf]
        %v607 = vld [vmem:[%s591 + $0x3c] sm:$0xf]
        %v608 = vperm.slane %v221, 2
        %v625 = vunpack.c.l.b16 %v592
        %v626 = vunpack.c.l.b16 %v593
        %v627 = vunpack.c.l.b16 %v594
        %v628 = vunpack.c.l.b16 %v595
        %v629 = vunpack.c.l.b16 %v596
        %v630 = vunpack.c.l.b16 %v597
        %v631 = vunpack.c.l.b16 %v598
        %v632 = vunpack.c.l.b16 %v599
        %v633 = vunpack.c.l.b16 %v600
        %v634 = vunpack.c.l.b16 %v601
        %v635 = vunpack.c.l.b16 %v602
        %v636 = vunpack.c.l.b16 %v603
        %v637 = vunpack.c.l.b16 %v604
        %v638 = vunpack.c.l.b16 %v605
        %v639 = vunpack.c.l.b16 %v606
        %v640 = vunpack.c.l.b16 %v607
        %v641 = vpack.c.b16 %v626, %v625
        %v642 = vpack.c.b16 %v628, %v627
        %v643 = vpack.c.b16 %v630, %v629
        %v644 = vpack.c.b16 %v632, %v631
        %v645 = vpack.c.b16 %v634, %v633
        %v646 = vpack.c.b16 %v636, %v635
        %v647 = vpack.c.b16 %v638, %v637
        %v648 = vpack.c.b16 %v640, %v639
        %657 = vmatpush.bf16.msra.mxu0 %v648
        %658 = vmatpush.bf16.msra.mxu0 %v647
        %659 = vmatpush.bf16.msra.mxu0 %v646
        %660 = vmatpush.bf16.msra.mxu0 %v645
        %661 = vmatpush.bf16.msra.mxu0 %v644
        %662 = vmatpush.bf16.msra.mxu0 %v643
        %663 = vmatpush.bf16.msra.mxu0 %v642
        %664 = vmatpush.bf16.msra.mxu0 %v641
        %665 = vmatmul.bf16.gmra.mxu0 %v590
        %v666 = vpop.f32.mrf.mxu0
        %v667 = vadd.f32 %v608, %v666
        %v668 = vpop.f32.mrf.mxu0
        %669 = vdwg.mxu0
        %v670 = vxor.u32 %v667, 2147483648
        %v671 = vmul.f32 %v670, 1.442695
        %v672 = vpow.pop %v671
        %v673 = vadd.f32 %v672, 1.0
        %v674 = vrcp.pop %v673
        %v675 = vmul.f32 %v673, %v674
        %v676 = vsub.f32 1.0, %v675
        %v677 = vmul.f32 %v674, %v676
        %v678 = vadd.f32 %v674, %v677
        %vm679 = vweird.f32 %v673
        %vm680 = vweird.f32 %v674
        %vm681 = vmor %vm679, %vm680
        %v682 = vsel %vm681, %v674, %v678
        %v683 = vand.u32 2147483647, %v673
        %vm684 = vcmp.eq.f32.partialorder %v683, 8.507059e+37
        %v685 = vand.u32 %v673, 2147483648
        %v686 = vor.u32 1.1754944e-38, %v685
        %v687 = vsel %vm684, %v686, %v682
        %v688 = vmul.f32 1.0, %v687
        %v689 = vmul.f32 %v667, %v688
        %v690 = vpack.c.bf16 %v689, %v689
        %s691 = scalar_lea.vmem [#allocation5], 192
        %v692 = vld [vmem:[%s691] sm:$0xf]
        %v693 = vld [vmem:[%s691 + $0x4] sm:$0xf]
        %v694 = vld [vmem:[%s691 + $0x8] sm:$0xf]
        %v695 = vld [vmem:[%s691 + $0xc] sm:$0xf]
        %v696 = vld [vmem:[%s691 + $0x10] sm:$0xf]
        %v697 = vld [vmem:[%s691 + $0x14] sm:$0xf]
        %v698 = vld [vmem:[%s691 + $0x18] sm:$0xf]
        %v699 = vld [vmem:[%s691 + $0x1c] sm:$0xf]
        %v700 = vld [vmem:[%s691 + $0x20] sm:$0xf]
        %v701 = vld [vmem:[%s691 + $0x24] sm:$0xf]
        %v702 = vld [vmem:[%s691 + $0x28] sm:$0xf]
        %v703 = vld [vmem:[%s691 + $0x2c] sm:$0xf]
        %v704 = vld [vmem:[%s691 + $0x30] sm:$0xf]
        %v705 = vld [vmem:[%s691 + $0x34] sm:$0xf]
        %v706 = vld [vmem:[%s691 + $0x38] sm:$0xf]
        %v707 = vld [vmem:[%s691 + $0x3c] sm:$0xf]
        %v708 = vperm.slane %v221, 3
        %v725 = vunpack.c.l.b16 %v692
        %v726 = vunpack.c.l.b16 %v693
        %v727 = vunpack.c.l.b16 %v694
        %v728 = vunpack.c.l.b16 %v695
        %v729 = vunpack.c.l.b16 %v696
        %v730 = vunpack.c.l.b16 %v697
        %v731 = vunpack.c.l.b16 %v698
        %v732 = vunpack.c.l.b16 %v699
        %v733 = vunpack.c.l.b16 %v700
        %v734 = vunpack.c.l.b16 %v701
        %v735 = vunpack.c.l.b16 %v702
        %v736 = vunpack.c.l.b16 %v703
        %v737 = vunpack.c.l.b16 %v704
        %v738 = vunpack.c.l.b16 %v705
        %v739 = vunpack.c.l.b16 %v706
        %v740 = vunpack.c.l.b16 %v707
        %v741 = vpack.c.b16 %v726, %v725
        %v742 = vpack.c.b16 %v728, %v727
        %v743 = vpack.c.b16 %v730, %v729
        %v744 = vpack.c.b16 %v732, %v731
        %v745 = vpack.c.b16 %v734, %v733
        %v746 = vpack.c.b16 %v736, %v735
        %v747 = vpack.c.b16 %v738, %v737
        %v748 = vpack.c.b16 %v740, %v739
        %757 = vmatpush.bf16.msra.mxu0 %v748
        %758 = vmatpush.bf16.msra.mxu0 %v747
        %759 = vmatpush.bf16.msra.mxu0 %v746
        %760 = vmatpush.bf16.msra.mxu0 %v745
        %761 = vmatpush.bf16.msra.mxu0 %v744
        %762 = vmatpush.bf16.msra.mxu0 %v743
        %763 = vmatpush.bf16.msra.mxu0 %v742
        %764 = vmatpush.bf16.msra.mxu0 %v741
        %765 = vmatmul.bf16.gmra.mxu0 %v690
        %v766 = vpop.f32.mrf.mxu0
        %v767 = vadd.f32 %v708, %v766
        %v768 = vpop.f32.mrf.mxu0
        %769 = vdwg.mxu0
        %v770 = vadd.f32 %v589, %v767
        %771 = vst [vmem:[%s218] sm:$0xff] %v770
        %s772 = sand.u32 %s97, 1
        %s773 = scalar_lea.sflag [#allocation4], %s772
        %s774 = sand.u32 %s97, 1
        %s775 = smul.addr %s774, 8
        %s776 = scalar_lea.vmem [#allocation8], %s775
        // Predicated region
        $region45: #{tpu_custom_call.1} parent=31 // pred_check
          %p777 = pneg %p107
        $region46: #{tpu_custom_call.1} parent=31 // pred_check_branch
          %779 = sbr.rel (%p777) target = $region48
        $region47: #{tpu_custom_call.1} parent=31 // pred_region
          %781 = vsyncadd %s773, 0
          %s782 = smul.addr %s21, 8
          %s783 = scalar_lea.hbm %s3, %s782
          %s785 = sshll.u32 %s776, 4
          %s786 = int_to_ptr.vmem [resolvable:$true] %s785
          %s787 = sshll.u32 %s783, 4
          %s788 = int_to_ptr.hbm [resolvable:$true] %s787
          %790 = dma.vmem_to_hbm [thread:$0]  %s786, 128, %s788, %s773
        $region48: #{tpu_custom_call.1} parent=31 // pred_fallthru
          _
      $region32: #{tpu_custom_call.1} parent=5 // pred_fallthru
        _
      %p791 = scmp.le.s32.totalorder 2, %s16
      // Predicated region
      $region49: #{tpu_custom_call.1} parent=5 // pred_check
        %p792 = pneg %p791
      $region50: #{tpu_custom_call.1} parent=5 // pred_check_branch
        %794 = sbr.rel (%p792) target = $region52
      $region51: #{tpu_custom_call.1} parent=5 // pred_region
        %s795 = ssub.s32 %s16, 2
        // Predicated region
        $region53: #{tpu_custom_call.1} parent=51 // pred_check
          %p796 = pneg %p113
        $region54: #{tpu_custom_call.1} parent=51 // pred_check_branch
          %798 = sbr.rel (%p796) target = $region56
        $region55: #{tpu_custom_call.1} parent=51 // pred_region
          %s799 = sand.u32 %s98, 1
          %s800 = scalar_lea.sflag [#allocation4], %s799
          %s801 = sand.u32 %s98, 1
          %s802 = smul.addr %s801, 8
          %s803 = scalar_lea.vmem [#allocation8], %s802
          %805 = dma.done %s800, 128
        $region56: #{tpu_custom_call.1} parent=51 // pred_fallthru
          _
      $region52: #{tpu_custom_call.1} parent=5 // pred_fallthru
        _
    $region6: #{tpu_custom_call.1} parent=1 // loop_footer
      %s20 = sadd.s32 1, %s16
    $region7: #{tpu_custom_call.1} parent=1 // loop_footer_branch
      %15 = sbr.rel target = $region3
    $region8: #{tpu_custom_call.1} parent=1 // loop_exit
      _
    %806 = vsyncpa [#allocation3], 1
    %s807 = scalar_lea.sflag [#allocation3], 1
    %808 = vsyncpa %s807, 1
    %809 = vsyncpa [#allocation6], 1
    %810 = vsyncpa [#allocation4], 1
    %s811 = scalar_lea.sflag [#allocation4], 1
    %812 = vsyncpa %s811, 1

</llo_original>
